<compile_context>
chip_gen: v7x
topology: tpu7x:2x2x1
jax: 0.10.0
libtpu: 0.0.40
codegen_flags: <defaults>
</compile_context>

<pallas_src>
import functools

import jax
import jax.numpy as jnp
from jax.experimental import pallas as pl
from jax.experimental.pallas import tpu as pltpu


def _round_up(x, m):
    return ((x + m - 1) // m) * m


def _fcnn_kernel(x_ref, *refs, num_layers):
    """Fused MLP forward for one batch tile.

    refs = (w0, b0, w1, b1, ..., w_{L-1}, b_{L-1}, o_ref)
    w_l: (Fin_l, Fout_l) pre-transposed bf16, b_l: (1, Fout_l) f32,
    all output dims lane-padded to 128.
    """
    o_ref = refs[-1]
    h = x_ref[...].astype(jnp.float32)
    for l in range(num_layers):
        w = refs[2 * l][...]          # bf16 (Fin, Fout_pad)
        b = refs[2 * l + 1][...]      # f32  (1, Fout_pad)
        # nn.Linear: y = x @ W^T + b; W already stored transposed -> plain x @ W.
        # bf16 operands on the MXU, f32 accumulation, f32 epilogue.
        h = jax.lax.dot_general(
            h.astype(w.dtype), w,
            dimension_numbers=(((1,), (0,)), ((), ())),
            preferred_element_type=jnp.float32,
        )
        h = h + b
        if l < num_layers - 1:        # hidden layers get ReLU; final layer does not
            h = jnp.maximum(h, 0.0)
    o_ref[...] = h.astype(o_ref.dtype)


def fused_fcnn_forward(x, weights_pad, biases_pad, tile_b, *,
                       single_buffer_params=True):
    """One pallas_call for the whole forward pass, gridded over batch tiles."""
    bp, fin = x.shape
    fout_pad = weights_pad[-1].shape[1]
    num_layers = len(weights_pad)
    assert bp % tile_b == 0

    kernel = functools.partial(_fcnn_kernel, num_layers=num_layers)

    def _param_spec(shape):
        # Weights/biases are resident across all batch tiles (index_map -> (0,0));
        # single-buffer them to halve their VMEM footprint.
        if single_buffer_params:
            return pl.BlockSpec(shape, lambda i: (0, 0),
                                pipeline_mode=pl.Buffered(1))
        return pl.BlockSpec(shape, lambda i: (0, 0))

    in_specs = [pl.BlockSpec((tile_b, fin), lambda i: (i, 0))]
    flat_params = []
    for w, b in zip(weights_pad, biases_pad):
        in_specs.append(_param_spec(w.shape))
        in_specs.append(_param_spec(b.shape))
        flat_params.append(w)
        flat_params.append(b)

    # Advisory cost estimate for XLA's scheduler.
    flops = 2 * bp * sum(int(w.shape[0]) * int(w.shape[1]) for w in weights_pad)
    bytes_accessed = (int(x.size) * x.dtype.itemsize
                      + sum(int(p.size) * p.dtype.itemsize for p in flat_params)
                      + bp * fout_pad * x.dtype.itemsize)
    cost = pl.CostEstimate(flops=flops, transcendentals=0,
                           bytes_accessed=int(bytes_accessed))

    # Explicit scoped-VMEM budget: resident params (x buffer_count) + pipelined
    # x/out buffers + inter-layer f32 temporaries, with ~1.5x headroom; clamped
    # to 64 MiB so it is valid on v7x as well as v5e/v6e.
    buf_count = 1 if single_buffer_params else 2
    param_bytes = sum(int(p.size) * p.dtype.itemsize for p in flat_params)
    max_width = max(int(w.shape[1]) for w in weights_pad)
    act_bytes = 2 * tile_b * (fin + fout_pad) * 4 + 2 * tile_b * max_width * 4
    vmem_limit = int(min(max(int(1.5 * (buf_count * param_bytes + act_bytes)),
                             32 << 20), 64 << 20))

    return pl.pallas_call(
        kernel,
        out_shape=jax.ShapeDtypeStruct((bp, fout_pad), x.dtype),
        grid=(bp // tile_b,),
        in_specs=in_specs,
        out_specs=pl.BlockSpec((tile_b, fout_pad), lambda i: (i, 0)),
        compiler_params=pltpu.CompilerParams(
            dimension_semantics=("parallel",),
            vmem_limit_bytes=vmem_limit,
        ),
        cost_estimate=cost,
    )(x, *flat_params)


def get_total_params_function(depth, units):
    total_params = 0
    for layer in range(1, depth + 2):
        total_params += units[layer] * (units[layer - 1] + 1)
    return total_params


class CustomFCNNPallas:
    """JAX/Pallas equivalent of the PyTorch CustomFCNN forward pass."""

    LANE = 128     # lane-pad layer OUTPUT dims to multiples of 128 (dense stores)
    SUBLANE = 8    # batch tiles are multiples of 8 rows
    MAX_TILE_B = 512          # per-review sweet spot for mem-bound batch tiles
    VMEM_BUDGET = 40 << 20    # v7x-safe (64 MiB/TC) working budget per core

    def __init__(self, depth, units, input_size=40, output_size=10, key=None):
        assert len(units) == depth + 2
        assert units[0] == input_size and units[-1] == output_size
        self.depth = depth
        self.units = units
        self.input_size = input_size
        self.output_size = output_size

        if key is None:
            key = jax.random.PRNGKey(0)

        # Original (unpadded, PyTorch-layout, f32) parameters for reference.
        self.weights = []   # (Fout, Fin)
        self.biases = []    # (Fout,)
        # Kernel-side parameters: pre-transposed, output-dim padded to 128,
        # weights in bf16 (MXU-native), biases in f32 (f32 epilogue).
        self._w_pad = []    # (Fin_pad_in, Fout_pad) bf16
        self._b_pad = []    # (1, Fout_pad) f32
        self._units_pad = ([units[0]]
                           + [_round_up(u, self.LANE) for u in units[1:]])

        for i in range(depth + 1):
            fin, fout = units[i], units[i + 1]
            fin_p, fout_p = self._units_pad[i], self._units_pad[i + 1]
            key, wk, bk = jax.random.split(key, 3)
            # kaiming_normal_(nonlinearity='relu'): std = sqrt(2 / fan_in)
            w = jax.random.normal(wk, (fout, fin), jnp.float32) * jnp.sqrt(2.0 / fin)
            # PyTorch default Linear bias init: U(-1/sqrt(fan_in), 1/sqrt(fan_in))
            bound = 1.0 / jnp.sqrt(float(fin))
            b = jax.random.uniform(bk, (fout,), jnp.float32, -bound, bound)
            self.weights.append(w)
            self.biases.append(b)

            w_pad = jnp.zeros((fin_p, fout_p), jnp.float32).at[:fin, :fout].set(w.T)
            b_pad = jnp.zeros((1, fout_p), jnp.float32).at[0, :fout].set(b)
            self._w_pad.append(w_pad.astype(jnp.bfloat16))
            self._b_pad.append(b_pad)

        # Resolved lazily on first call: whether pl.Buffered(1) param specs work.
        self._single_buffer_params = None

    # ---- tiling ------------------------------------------------------------
    def _choose_tiling(self, batch):
        bp0 = _round_up(batch, self.SUBLANE)
        if bp0 <= 64:
            # Tiny batch: one grid step, no benefit from splitting.
            return bp0, bp0

        # Prefer >= 2 grid steps so dimension_semantics=("parallel",) can shard
        # the batch across v7x's two TensorCores; cap tiles at ~512 rows.
        n_steps = max(2, pl.cdiv(bp0, self.MAX_TILE_B))
        tile_b = _round_up(pl.cdiv(bp0, n_steps), self.SUBLANE)

        # VMEM-fit check (single-buffered bf16 params + act/tmp buffers).
        param_bytes = sum(int(w.size) * w.dtype.itemsize
                          + int(b.size) * b.dtype.itemsize
                          for w, b in zip(self._w_pad, self._b_pad))
        fin = self.input_size
        fout_pad = self._units_pad[-1]
        max_width = max(self._units_pad[1:])

        def vmem_estimate(t):
            return (param_bytes
                    + 2 * t * (fin + fout_pad) * 4
                    + 2 * t * max_width * 4)

        while tile_b > self.SUBLANE and vmem_estimate(tile_b) > self.VMEM_BUDGET:
            tile_b = _round_up(max(tile_b // 2, self.SUBLANE), self.SUBLANE)
        # TODO(synk): if params alone exceed the VMEM budget, stream weights
        # layer-by-layer (pltpu.emit_pipeline) instead of keeping all resident.

        bp = _round_up(bp0, tile_b)     # pad only to a multiple of the tile
        return bp, tile_b

    # ---- forward -----------------------------------------------------------
    def __call__(self, x):
        batch, fin = x.shape
        assert fin == self.input_size

        bp, tile_b = self._choose_tiling(batch)

        # x keeps its natural feature width (no lane padding in the wrapper);
        # only row-pad the batch, and only when needed.
        if bp != batch:
            x_in = jnp.zeros((bp, fin), x.dtype).at[:batch, :].set(x)
        else:
            x_in = x

        candidates = ([True, False] if self._single_buffer_params is None
                      else [self._single_buffer_params])
        last_err = None
        for sb in candidates:
            try:
                out_pad = fused_fcnn_forward(
                    x_in, self._w_pad, self._b_pad, tile_b,
                    single_buffer_params=sb)
                if self._single_buffer_params is None:
                    # Probe: force compile+run so failures surface inside the try.
                    out_pad = jax.block_until_ready(out_pad)
                self._single_buffer_params = sb
                return out_pad[:batch, :self.output_size]
            except Exception as e:  # noqa: BLE001 - fall back to default buffering
                last_err = e
        raise last_err

    def get_total_params(self):
        return get_total_params_function(self.depth, self.units)


if __name__ == "__main__":
    depth = 2
    units = [40, 32, 32, 10]   # [input_size, hidden..., output_size]
    batch = 8

    key = jax.random.PRNGKey(0)
    key, xk = jax.random.split(key)
    x = jax.random.normal(xk, (batch, units[0]), jnp.float32)

    model = CustomFCNNPallas(depth, units, input_size=units[0],
                             output_size=units[-1], key=key)

    out = model(x)
    out = jax.block_until_ready(out)

    # Pure-JAX f32 reference of the same forward pass (unpadded f32 params).
    # The kernel uses bf16 MXU operands with f32 accumulation, so tolerances
    # are loosened accordingly.
    ref = x
    for i in range(depth):
        ref = jnp.maximum(ref @ model.weights[i].T + model.biases[i], 0.0)
    ref = ref @ model.weights[-1].T + model.biases[-1]

    assert out.shape == (batch, units[-1])
    assert jnp.allclose(out, ref, atol=5e-2, rtol=5e-2), (
        float(jnp.max(jnp.abs(out - ref))))
    assert model.get_total_params() == get_total_params_function(depth, units)

    print("KERNEL_OK")
</pallas_src>

<mosaic_0001>
module attributes {stable_mosaic.version = 11 : i64} {
  func.func @_fcnn_kernel(%arg0: i32, %arg1: memref<8x40xf32, #tpu.memory_space<vmem>>, %arg2: memref<40x128xbf16, #tpu.memory_space<vmem>>, %arg3: memref<1x128xf32, #tpu.memory_space<vmem>>, %arg4: memref<128x128xbf16, #tpu.memory_space<vmem>>, %arg5: memref<1x128xf32, #tpu.memory_space<vmem>>, %arg6: memref<128x128xbf16, #tpu.memory_space<vmem>>, %arg7: memref<1x128xf32, #tpu.memory_space<vmem>>, %arg8: memref<8x128xf32, #tpu.memory_space<vmem>>) attributes {dimension_semantics = [#tpu.dimension_semantics<parallel>], iteration_bounds = array<i64: 1>, scalar_prefetch = 0 : i64, scratch_operands = 0 : i64, tpu.core_type = #tpu.core_type<tc>, window_params = [{transform_indices = @transform_0, window_bounds = array<i64: 8, 40>}, {pipeline_mode = #tpu.pipeline_mode<synchronous>, transform_indices = @transform_1, window_bounds = array<i64: 40, 128>}, {pipeline_mode = #tpu.pipeline_mode<synchronous>, transform_indices = @transform_2, window_bounds = array<i64: 1, 128>}, {pipeline_mode = #tpu.pipeline_mode<synchronous>, transform_indices = @transform_3, window_bounds = array<i64: 128, 128>}, {pipeline_mode = #tpu.pipeline_mode<synchronous>, transform_indices = @transform_4, window_bounds = array<i64: 1, 128>}, {pipeline_mode = #tpu.pipeline_mode<synchronous>, transform_indices = @transform_5, window_bounds = array<i64: 128, 128>}, {pipeline_mode = #tpu.pipeline_mode<synchronous>, transform_indices = @transform_6, window_bounds = array<i64: 1, 128>}, {transform_indices = @transform_7, window_bounds = array<i64: 8, 128>}]} {
    %c0 = arith.constant 0 : index
    %c0_0 = arith.constant 0 : index
    %0 = vector.load %arg1[%c0, %c0_0] : memref<8x40xf32, #tpu.memory_space<vmem>>, vector<8x40xf32>
    %c0_1 = arith.constant 0 : index
    %c0_2 = arith.constant 0 : index
    %1 = vector.load %arg2[%c0_1, %c0_2] : memref<40x128xbf16, #tpu.memory_space<vmem>>, vector<40x128xbf16>
    %c0_3 = arith.constant 0 : index
    %c0_4 = arith.constant 0 : index
    %2 = vector.load %arg3[%c0_3, %c0_4] : memref<1x128xf32, #tpu.memory_space<vmem>>, vector<1x128xf32>
    %3 = arith.truncf %0 : vector<8x40xf32> to vector<8x40xbf16>
    %cst = arith.constant dense<0.000000e+00> : vector<8x128xf32>
    %4 = tpu.matmul %3, %1, %cst {dimension_numbers = #tpu.dot_dimension_numbers<[1], [0], [0], [1], [0, 0, 1, 1], [], []>} : vector<8x40xbf16>, vector<40x128xbf16>, vector<8x128xf32> -> vector<8x128xf32>
    %5 = vector.broadcast %2 : vector<1x128xf32> to vector<8x128xf32>
    %6 = arith.addf %4, %5 : vector<8x128xf32>
    %cst_5 = arith.constant 0.000000e+00 : f32
    %7 = vector.broadcast %cst_5 : f32 to vector<8x128xf32>
    %8 = arith.maximumf %6, %7 : vector<8x128xf32>
    %c0_6 = arith.constant 0 : index
    %c0_7 = arith.constant 0 : index
    %9 = vector.load %arg4[%c0_6, %c0_7] : memref<128x128xbf16, #tpu.memory_space<vmem>>, vector<128x128xbf16>
    %c0_8 = arith.constant 0 : index
    %c0_9 = arith.constant 0 : index
    %10 = vector.load %arg5[%c0_8, %c0_9] : memref<1x128xf32, #tpu.memory_space<vmem>>, vector<1x128xf32>
    %11 = arith.truncf %8 : vector<8x128xf32> to vector<8x128xbf16>
    %cst_10 = arith.constant dense<0.000000e+00> : vector<8x128xf32>
    %12 = tpu.matmul %11, %9, %cst_10 {dimension_numbers = #tpu.dot_dimension_numbers<[1], [0], [0], [1], [0, 0, 1, 1], [], []>} : vector<8x128xbf16>, vector<128x128xbf16>, vector<8x128xf32> -> vector<8x128xf32>
    %13 = vector.broadcast %10 : vector<1x128xf32> to vector<8x128xf32>
    %14 = arith.addf %12, %13 : vector<8x128xf32>
    %cst_11 = arith.constant 0.000000e+00 : f32
    %15 = vector.broadcast %cst_11 : f32 to vector<8x128xf32>
    %16 = arith.maximumf %14, %15 : vector<8x128xf32>
    %c0_12 = arith.constant 0 : index
    %c0_13 = arith.constant 0 : index
    %17 = vector.load %arg6[%c0_12, %c0_13] : memref<128x128xbf16, #tpu.memory_space<vmem>>, vector<128x128xbf16>
    %c0_14 = arith.constant 0 : index
    %c0_15 = arith.constant 0 : index
    %18 = vector.load %arg7[%c0_14, %c0_15] : memref<1x128xf32, #tpu.memory_space<vmem>>, vector<1x128xf32>
    %19 = arith.truncf %16 : vector<8x128xf32> to vector<8x128xbf16>
    %cst_16 = arith.constant dense<0.000000e+00> : vector<8x128xf32>
    %20 = tpu.matmul %19, %17, %cst_16 {dimension_numbers = #tpu.dot_dimension_numbers<[1], [0], [0], [1], [0, 0, 1, 1], [], []>} : vector<8x128xbf16>, vector<128x128xbf16>, vector<8x128xf32> -> vector<8x128xf32>
    %21 = vector.broadcast %18 : vector<1x128xf32> to vector<8x128xf32>
    %22 = arith.addf %20, %21 : vector<8x128xf32>
    %c0_17 = arith.constant 0 : index
    %c0_18 = arith.constant 0 : index
    %23 = vector.load %arg8[%c0_17, %c0_18] : memref<8x128xf32, #tpu.memory_space<vmem>>, vector<8x128xf32>
    tpu.vector_store %arg8[%c0_17, %c0_18], %22 {strides = array<i32>} : memref<8x128xf32, #tpu.memory_space<vmem>>, vector<8x128xf32>,
    return
  }
  func.func @transform_0(%arg0: i32) -> (i32, i32) {
    %c0_i32 = arith.constant 0 : i32
    %c0_i32_0 = arith.constant 0 : i32
    return %arg0, %c0_i32 : i32, i32
  }
  func.func @transform_1(%arg0: i32) -> (i32, i32) {
    %c0_i32 = arith.constant 0 : i32
    %c0_i32_0 = arith.constant 0 : i32
    %c0_i32_1 = arith.constant 0 : i32
    return %c0_i32, %c0_i32_0 : i32, i32
  }
  func.func @transform_2(%arg0: i32) -> (i32, i32) {
    %c0_i32 = arith.constant 0 : i32
    %c0_i32_0 = arith.constant 0 : i32
    %c0_i32_1 = arith.constant 0 : i32
    return %c0_i32, %c0_i32_0 : i32, i32
  }
  func.func @transform_3(%arg0: i32) -> (i32, i32) {
    %c0_i32 = arith.constant 0 : i32
    %c0_i32_0 = arith.constant 0 : i32
    %c0_i32_1 = arith.constant 0 : i32
    return %c0_i32, %c0_i32_0 : i32, i32
  }
  func.func @transform_4(%arg0: i32) -> (i32, i32) {
    %c0_i32 = arith.constant 0 : i32
    %c0_i32_0 = arith.constant 0 : i32
    %c0_i32_1 = arith.constant 0 : i32
    return %c0_i32, %c0_i32_0 : i32, i32
  }
  func.func @transform_5(%arg0: i32) -> (i32, i32) {
    %c0_i32 = arith.constant 0 : i32
    %c0_i32_0 = arith.constant 0 : i32
    %c0_i32_1 = arith.constant 0 : i32
    return %c0_i32, %c0_i32_0 : i32, i32
  }
  func.func @transform_6(%arg0: i32) -> (i32, i32) {
    %c0_i32 = arith.constant 0 : i32
    %c0_i32_0 = arith.constant 0 : i32
    %c0_i32_1 = arith.constant 0 : i32
    return %c0_i32, %c0_i32_0 : i32, i32
  }
  func.func @transform_7(%arg0: i32) -> (i32, i32) {
    %c0_i32 = arith.constant 0 : i32
    %c0_i32_0 = arith.constant 0 : i32
    return %arg0, %c0_i32 : i32, i32
  }
}

module attributes {stable_mosaic.version = 11 : i64} {
  func.func @_fcnn_kernel(%arg0: i32, %arg1: memref<8x40xf32, #tpu.memory_space<vmem>>, %arg2: memref<40x128xbf16, #tpu.memory_space<vmem>>, %arg3: memref<1x128xf32, #tpu.memory_space<vmem>>, %arg4: memref<128x128xbf16, #tpu.memory_space<vmem>>, %arg5: memref<1x128xf32, #tpu.memory_space<vmem>>, %arg6: memref<128x128xbf16, #tpu.memory_space<vmem>>, %arg7: memref<1x128xf32, #tpu.memory_space<vmem>>, %arg8: memref<8x128xf32, #tpu.memory_space<vmem>>) attributes {dimension_semantics = [#tpu.dimension_semantics<parallel>], iteration_bounds = array<i64: 1>, scalar_prefetch = 0 : i64, scratch_operands = 0 : i64, tpu.core_type = #tpu.core_type<tc>, window_params = [{transform_indices = @transform_0, window_bounds = array<i64: 8, 40>}, {pipeline_mode = #tpu.pipeline_mode<synchronous>, transform_indices = @transform_1, window_bounds = array<i64: 40, 128>}, {pipeline_mode = #tpu.pipeline_mode<synchronous>, transform_indices = @transform_2, window_bounds = array<i64: 1, 128>}, {pipeline_mode = #tpu.pipeline_mode<synchronous>, transform_indices = @transform_3, window_bounds = array<i64: 128, 128>}, {pipeline_mode = #tpu.pipeline_mode<synchronous>, transform_indices = @transform_4, window_bounds = array<i64: 1, 128>}, {pipeline_mode = #tpu.pipeline_mode<synchronous>, transform_indices = @transform_5, window_bounds = array<i64: 128, 128>}, {pipeline_mode = #tpu.pipeline_mode<synchronous>, transform_indices = @transform_6, window_bounds = array<i64: 1, 128>}, {transform_indices = @transform_7, window_bounds = array<i64: 8, 128>}]} {
    %c0 = arith.constant 0 : index
    %c0_0 = arith.constant 0 : index
    %0 = vector.load %arg1[%c0, %c0_0] : memref<8x40xf32, #tpu.memory_space<vmem>>, vector<8x40xf32>
    %c0_1 = arith.constant 0 : index
    %c0_2 = arith.constant 0 : index
    %1 = vector.load %arg2[%c0_1, %c0_2] : memref<40x128xbf16, #tpu.memory_space<vmem>>, vector<40x128xbf16>
    %c0_3 = arith.constant 0 : index
    %c0_4 = arith.constant 0 : index
    %2 = vector.load %arg3[%c0_3, %c0_4] : memref<1x128xf32, #tpu.memory_space<vmem>>, vector<1x128xf32>
    %3 = arith.truncf %0 : vector<8x40xf32> to vector<8x40xbf16>
    %cst = arith.constant dense<0.000000e+00> : vector<8x128xf32>
    %4 = tpu.matmul %3, %1, %cst {dimension_numbers = #tpu.dot_dimension_numbers<[1], [0], [0], [1], [0, 0, 1, 1], [], []>} : vector<8x40xbf16>, vector<40x128xbf16>, vector<8x128xf32> -> vector<8x128xf32>
    %5 = vector.broadcast %2 : vector<1x128xf32> to vector<8x128xf32>
    %6 = arith.addf %4, %5 : vector<8x128xf32>
    %cst_5 = arith.constant 0.000000e+00 : f32
    %7 = vector.broadcast %cst_5 : f32 to vector<8x128xf32>
    %8 = arith.maximumf %6, %7 : vector<8x128xf32>
    %c0_6 = arith.constant 0 : index
    %c0_7 = arith.constant 0 : index
    %9 = vector.load %arg4[%c0_6, %c0_7] : memref<128x128xbf16, #tpu.memory_space<vmem>>, vector<128x128xbf16>
    %c0_8 = arith.constant 0 : index
    %c0_9 = arith.constant 0 : index
    %10 = vector.load %arg5[%c0_8, %c0_9] : memref<1x128xf32, #tpu.memory_space<vmem>>, vector<1x128xf32>
    %11 = arith.truncf %8 : vector<8x128xf32> to vector<8x128xbf16>
    %cst_10 = arith.constant dense<0.000000e+00> : vector<8x128xf32>
    %12 = tpu.matmul %11, %9, %cst_10 {dimension_numbers = #tpu.dot_dimension_numbers<[1], [0], [0], [1], [0, 0, 1, 1], [], []>} : vector<8x128xbf16>, vector<128x128xbf16>, vector<8x128xf32> -> vector<8x128xf32>
    %13 = vector.broadcast %10 : vector<1x128xf32> to vector<8x128xf32>
    %14 = arith.addf %12, %13 : vector<8x128xf32>
    %cst_11 = arith.constant 0.000000e+00 : f32
    %15 = vector.broadcast %cst_11 : f32 to vector<8x128xf32>
    %16 = arith.maximumf %14, %15 : vector<8x128xf32>
    %c0_12 = arith.constant 0 : index
    %c0_13 = arith.constant 0 : index
    %17 = vector.load %arg6[%c0_12, %c0_13] : memref<128x128xbf16, #tpu.memory_space<vmem>>, vector<128x128xbf16>
    %c0_14 = arith.constant 0 : index
    %c0_15 = arith.constant 0 : index
    %18 = vector.load %arg7[%c0_14, %c0_15] : memref<1x128xf32, #tpu.memory_space<vmem>>, vector<1x128xf32>
    %19 = arith.truncf %16 : vector<8x128xf32> to vector<8x128xbf16>
    %cst_16 = arith.constant dense<0.000000e+00> : vector<8x128xf32>
    %20 = tpu.matmul %19, %17, %cst_16 {dimension_numbers = #tpu.dot_dimension_numbers<[1], [0], [0], [1], [0, 0, 1, 1], [], []>} : vector<8x128xbf16>, vector<128x128xbf16>, vector<8x128xf32> -> vector<8x128xf32>
    %21 = vector.broadcast %18 : vector<1x128xf32> to vector<8x128xf32>
    %22 = arith.addf %20, %21 : vector<8x128xf32>
    %c0_17 = arith.constant 0 : index
    %c0_18 = arith.constant 0 : index
    %23 = vector.load %arg8[%c0_17, %c0_18] : memref<8x128xf32, #tpu.memory_space<vmem>>, vector<8x128xf32>
    tpu.vector_store %arg8[%c0_17, %c0_18], %22 {strides = array<i32>} : memref<8x128xf32, #tpu.memory_space<vmem>>, vector<8x128xf32>,
    return
  }
  func.func @transform_0(%arg0: i32) -> (i32, i32) {
    %c0_i32 = arith.constant 0 : i32
    %c0_i32_0 = arith.constant 0 : i32
    return %arg0, %c0_i32 : i32, i32
  }
  func.func @transform_1(%arg0: i32) -> (i32, i32) {
    %c0_i32 = arith.constant 0 : i32
    %c0_i32_0 = arith.constant 0 : i32
    %c0_i32_1 = arith.constant 0 : i32
    return %c0_i32, %c0_i32_0 : i32, i32
  }
  func.func @transform_2(%arg0: i32) -> (i32, i32) {
    %c0_i32 = arith.constant 0 : i32
    %c0_i32_0 = arith.constant 0 : i32
    %c0_i32_1 = arith.constant 0 : i32
    return %c0_i32, %c0_i32_0 : i32, i32
  }
  func.func @transform_3(%arg0: i32) -> (i32, i32) {
    %c0_i32 = arith.constant 0 : i32
    %c0_i32_0 = arith.constant 0 : i32
    %c0_i32_1 = arith.constant 0 : i32
    return %c0_i32, %c0_i32_0 : i32, i32
  }
  func.func @transform_4(%arg0: i32) -> (i32, i32) {
    %c0_i32 = arith.constant 0 : i32
    %c0_i32_0 = arith.constant 0 : i32
    %c0_i32_1 = arith.constant 0 : i32
    return %c0_i32, %c0_i32_0 : i32, i32
  }
  func.func @transform_5(%arg0: i32) -> (i32, i32) {
    %c0_i32 = arith.constant 0 : i32
    %c0_i32_0 = arith.constant 0 : i32
    %c0_i32_1 = arith.constant 0 : i32
    return %c0_i32, %c0_i32_0 : i32, i32
  }
  func.func @transform_6(%arg0: i32) -> (i32, i32) {
    %c0_i32 = arith.constant 0 : i32
    %c0_i32_0 = arith.constant 0 : i32
    %c0_i32_1 = arith.constant 0 : i32
    return %c0_i32, %c0_i32_0 : i32, i32
  }
  func.func @transform_7(%arg0: i32) -> (i32, i32) {
    %c0_i32 = arith.constant 0 : i32
    %c0_i32_0 = arith.constant 0 : i32
    return %arg0, %c0_i32 : i32, i32
  }
}

</mosaic_0001>

<llo_original>
// kernel: tpu_custom_call.1
$region0: #{tpu_custom_call.1}
  #allocation0 [shape = 'u32[]', space=smem, size = 0x4, offset = 0x4, fixed_abs, tag = 'smem constant byte address 0x4 - core index']
  #allocation1 [shape = 'u32[144,128]{1,0:T(1,128)}', space=vmem, size = 0x12000, scoped, tag = 'internal scratch']
  %s0 = inlined_call_operand.hbm [shape: f32[8,40], index: 0, kind: input, shape index: {}]
  %s1 = inlined_call_operand.hbm [shape: bf16[40,128], index: 1, kind: input, shape index: {}]
  %s2 = inlined_call_operand.vmem [shape: f32[1,128], index: 2, kind: input, shape index: {}]
  %s3 = inlined_call_operand.hbm [shape: bf16[128,128], index: 3, kind: input, shape index: {}]
  %s4 = inlined_call_operand.vmem [shape: f32[1,128], index: 4, kind: input, shape index: {}]
  %s5 = inlined_call_operand.hbm [shape: bf16[128,128], index: 5, kind: input, shape index: {}]
  %s6 = inlined_call_operand.vmem [shape: f32[1,128], index: 6, kind: input, shape index: {}]
  %s7 = inlined_call_operand.hbm [shape: f32[8,128], index: 7, kind: output, shape index: {}]
  %s8 = sld [smem:[#allocation0]]
  $region54: #{tpu_custom_call.1} parent=0
    _
  %s10 = ssub.s32 1, %s8
  %s11 = scalar_select 0, %s10, %s8
  $region1: #{tpu_custom_call.1} parent=0
    #allocation2 [shape = 'u8[4096]{0}', space=vmem, size = 0x1000, scoped, tag = 'input window, operand 0, single buffered']
    #allocation3 [shape = 's32[1]{0}', space=sflag, size = 0x4, scoped, tag = 'scoped memory for tpu_custom_call.1']
    #allocation4 [shape = 's32[1]{0}', space=sflag, size = 0x4, scoped, tag = 'scoped memory for tpu_custom_call.1']
    #allocation5 [shape = 'u8[10240]{0}', space=vmem, size = 0x2800, scoped, tag = 'input window, operand 1, single buffered']
    #allocation6 [shape = 's32[1]{0}', space=sflag, size = 0x4, scoped, tag = 'scoped memory for tpu_custom_call.1']
    #allocation7 [shape = 'u8[32768]{0}', space=vmem, size = 0x8000, scoped, tag = 'input window, operand 3, single buffered']
    #allocation8 [shape = 'u8[32768]{0}', space=vmem, size = 0x8000, scoped, tag = 'input window, operand 5, single buffered']
    #allocation9 [shape = 's32[1]{0}', space=sflag, size = 0x4, scoped, tag = 'scoped memory for tpu_custom_call.1']
    #allocation10 [shape = 'u8[4096]{0}', space=vmem, size = 0x1000, scoped, tag = 'output window, operand 0, single buffered']
    %12 = vsyncpa [#allocation3], 0
    %13 = vsyncpa [#allocation6], 0
    %14 = vsyncpa [#allocation9], 0
    %15 = vsyncpa [#allocation4], 0
    // Predicated region
    $region2: #{tpu_custom_call.1} parent=1 // pred_check
      _
    $region3: #{tpu_custom_call.1} parent=1 // pred_check_branch
      %17 = sbr.rel (0) target = $region5
    $region4: #{tpu_custom_call.1} parent=1 // pred_region
      %s19 = ssub.s32 128, 128
      %20 = vsyncadd [#allocation3], %s19
      %s22 = sshll.u32 [#allocation2], 4
      %s23 = int_to_ptr.vmem [resolvable:$true] %s22
      %25 = dma.hbm_to_vmem [thread:$0]  %s0, 128, %s23, [#allocation3]
    $region5: #{tpu_custom_call.1} parent=1 // pred_fallthru
      _
    // Predicated region
    $region6: #{tpu_custom_call.1} parent=1 // pred_check
      _
    $region7: #{tpu_custom_call.1} parent=1 // pred_check_branch
      %27 = sbr.rel (0) target = $region9
    $region8: #{tpu_custom_call.1} parent=1 // pred_region
      %s29 = ssub.s32 320, 320
      %30 = vsyncadd [#allocation6], %s29
      %s31 = sshll.u32 [#allocation5], 4
      %s32 = int_to_ptr.vmem [resolvable:$true] %s31
      %37 = dma.hbm_to_vmem [thread:$0]  %s1, 320, %s32, [#allocation6], 64, 64, 4
    $region9: #{tpu_custom_call.1} parent=1 // pred_fallthru
      _
    // Predicated region
    $region10: #{tpu_custom_call.1} parent=1 // pred_check
      _
    $region11: #{tpu_custom_call.1} parent=1 // pred_check_branch
      %39 = sbr.rel (0) target = $region13
    $region12: #{tpu_custom_call.1} parent=1 // pred_region
      _
    $region13: #{tpu_custom_call.1} parent=1 // pred_fallthru
      _
    // Predicated region
    $region14: #{tpu_custom_call.1} parent=1 // pred_check
      _
    $region15: #{tpu_custom_call.1} parent=1 // pred_check_branch
      %41 = sbr.rel (0) target = $region17
    $region16: #{tpu_custom_call.1} parent=1 // pred_region
      %s43 = ssub.s32 1024, 1024
      %44 = vsyncadd [#allocation6], %s43
      %s45 = sshll.u32 [#allocation7], 4
      %s46 = int_to_ptr.vmem [resolvable:$true] %s45
      %51 = dma.hbm_to_vmem [thread:$0]  %s3, 1024, %s46, [#allocation6], 64, 64, 4
    $region17: #{tpu_custom_call.1} parent=1 // pred_fallthru
      _
    // Predicated region
    $region18: #{tpu_custom_call.1} parent=1 // pred_check
      _
    $region19: #{tpu_custom_call.1} parent=1 // pred_check_branch
      %53 = sbr.rel (0) target = $region21
    $region20: #{tpu_custom_call.1} parent=1 // pred_region
      _
    $region21: #{tpu_custom_call.1} parent=1 // pred_fallthru
      _
    // Predicated region
    $region22: #{tpu_custom_call.1} parent=1 // pred_check
      _
    $region23: #{tpu_custom_call.1} parent=1 // pred_check_branch
      %55 = sbr.rel (0) target = $region25
    $region24: #{tpu_custom_call.1} parent=1 // pred_region
      %s57 = ssub.s32 1024, 1024
      %58 = vsyncadd [#allocation9], %s57
      %s59 = sshll.u32 [#allocation8], 4
      %s60 = int_to_ptr.vmem [resolvable:$true] %s59
      %65 = dma.hbm_to_vmem [thread:$0]  %s5, 1024, %s60, [#allocation9], 64, 64, 4
    $region25: #{tpu_custom_call.1} parent=1 // pred_fallthru
      _
    // Predicated region
    $region26: #{tpu_custom_call.1} parent=1 // pred_check
      _
    $region27: #{tpu_custom_call.1} parent=1 // pred_check_branch
      %67 = sbr.rel (0) target = $region29
    $region28: #{tpu_custom_call.1} parent=1 // pred_region
      _
    $region29: #{tpu_custom_call.1} parent=1 // pred_fallthru
      _
    // Predicated region
    $region30: #{tpu_custom_call.1} parent=1 // pred_check
      _
    $region31: #{tpu_custom_call.1} parent=1 // pred_check_branch
      %69 = sbr.rel (0) target = $region33
    $region32: #{tpu_custom_call.1} parent=1 // pred_region
      %70 = dma.done [#allocation3], 128
    $region33: #{tpu_custom_call.1} parent=1 // pred_fallthru
      _
    // Predicated region
    $region34: #{tpu_custom_call.1} parent=1 // pred_check
      _
    $region35: #{tpu_custom_call.1} parent=1 // pred_check_branch
      %72 = sbr.rel (0) target = $region37
    $region36: #{tpu_custom_call.1} parent=1 // pred_region
      %73 = dma.done [#allocation6], 320
    $region37: #{tpu_custom_call.1} parent=1 // pred_fallthru
      _
    // Predicated region
    $region38: #{tpu_custom_call.1} parent=1 // pred_check
      _
    $region39: #{tpu_custom_call.1} parent=1 // pred_check_branch
      %75 = sbr.rel (0) target = $region41
    $region40: #{tpu_custom_call.1} parent=1 // pred_region
      %76 = dma.done [#allocation6], 1024
    $region41: #{tpu_custom_call.1} parent=1 // pred_fallthru
      _
    // Predicated region
    $region42: #{tpu_custom_call.1} parent=1 // pred_check
      _
    $region43: #{tpu_custom_call.1} parent=1 // pred_check_branch
      %78 = sbr.rel (0) target = $region45
    $region44: #{tpu_custom_call.1} parent=1 // pred_region
      %79 = dma.done [#allocation9], 1024
    $region45: #{tpu_custom_call.1} parent=1 // pred_fallthru
      _
    %v81 = vld [vmem:[#allocation2] sm:$0xff]
    %v82 = vld [vmem:[#allocation5] sm:$0xf]
    %v83 = vld [vmem:[#allocation5 + $0x4] sm:$0xf]
    %v84 = vld [vmem:[#allocation5 + $0x8] sm:$0xf]
    %v85 = vld [vmem:[#allocation5 + $0xc] sm:$0xf]
    %v86 = vld [vmem:[#allocation5 + $0x10] sm:$0xf]
    %v87 = vld [vmem:[%s2] sm:$0x1]
    %v88 = vpack.c.bf16 %v81, %v81
    %v90 = vlaneseq
    %v91 = vshrl.u32 %v90, 7
    %v92 = vsub.s32 0, %v91
    %v93 = vrot.slane %v87, %v92
    %v100 = vunpack.c.l.b16 %v82
    %v101 = vunpack.c.l.b16 %v83
    %v102 = vunpack.c.l.b16 %v84
    %v103 = vunpack.c.l.b16 %v85
    %v104 = vunpack.c.l.b16 %v86
    %v105 = vpack.c.b16 %v101, %v100
    %v106 = vpack.c.b16 %v103, %v102
    %v107 = vpack.c.b16 %v104, %v104
    %vm110 = vcmask 326656
    %v112 = vsel %vm110, %v88, 0
    %vm114 = vcmask 1043456
    %v116 = vsel %vm114, %v107, 0
    %118 = vmatprep.subr.bf16.mxu0 0
    %119 = vmatpush1.bf16.msra.mxu0 %v105
    %120 = vmatprep.subr.bf16.mxu0 0
    %121 = vmatpush1.bf16.msra.mxu0 %v106
    %122 = vmatprep.subr.bf16.mxu0 0
    %123 = vmatpush1.bf16.msra.mxu0 %v116
    %124 = vmatprep.subr.bf16.mxu0 0
    %125 = vmatpush1.bf16.msra.mxu0 0
    %126 = vmatprep.subr.bf16.mxu0 0
    %127 = vmatpush1.bf16.msra.mxu0 0
    %128 = vmatprep.subr.bf16.mxu0 0
    %129 = vmatpush1.bf16.msra.mxu0 0
    %130 = vmatprep.subr.bf16.mxu0 0
    %131 = vmatpush1.bf16.msra.mxu0 0
    %132 = vmatprep.subr.bf16.mxu0 0
    %133 = vmatpush1.bf16.msra.mxu0 0
    %134 = vmatprep.subr.bf16.mxu0 0
    %135 = vmatpush1.bf16.msra.mxu0 0
    %136 = vmatprep.subr.bf16.mxu0 0
    %137 = vmatpush1.bf16.msra.mxu0 0
    %138 = vmatprep.subr.bf16.mxu0 0
    %139 = vmatpush1.bf16.msra.mxu0 0
    %140 = vmatprep.subr.bf16.mxu0 0
    %141 = vmatpush1.bf16.msra.mxu0 0
    %142 = vmatprep.subr.bf16.mxu0 0
    %143 = vmatpush1.bf16.msra.mxu0 0
    %144 = vmatprep.subr.bf16.mxu0 0
    %145 = vmatpush1.bf16.msra.mxu0 0
    %146 = vmatprep.subr.bf16.mxu0 0
    %147 = vmatpush1.bf16.msra.mxu0 0
    %148 = vmatprep.subr.bf16.mxu0 0
    %149 = vmatpush1.bf16.msra.mxu0 0
    %150 = vmatprep.mubr.bf16.mxu0 0
    %151 = vmatmul.mubr.bf16.gmra.mrb[0].mxu0 %v112
    %v152 = vpop.f32.mrb[0].mxu0
    %v153 = vadd.f32 %v93, %v152
    %v154 = vpop.f32.mrb[0].mxu0
    %v155 = vpop.f32.mrb[0].mxu0
    %v156 = vpop.f32.mrb[0].mxu0
    %157 = vdwg.mxu0
    %v158 = vmax.f32 %v153, 0.0
    %v159 = vld [vmem:[#allocation7] sm:$0xf]
    %v160 = vld [vmem:[#allocation7 + $0x4] sm:$0xf]
    %v161 = vld [vmem:[#allocation7 + $0x8] sm:$0xf]
    %v162 = vld [vmem:[#allocation7 + $0xc] sm:$0xf]
    %v163 = vld [vmem:[#allocation7 + $0x10] sm:$0xf]
    %v164 = vld [vmem:[#allocation7 + $0x14] sm:$0xf]
    %v165 = vld [vmem:[#allocation7 + $0x18] sm:$0xf]
    %v166 = vld [vmem:[#allocation7 + $0x1c] sm:$0xf]
    %v167 = vld [vmem:[#allocation7 + $0x20] sm:$0xf]
    %v168 = vld [vmem:[#allocation7 + $0x24] sm:$0xf]
    %v169 = vld [vmem:[#allocation7 + $0x28] sm:$0xf]
    %v170 = vld [vmem:[#allocation7 + $0x2c] sm:$0xf]
    %v171 = vld [vmem:[#allocation7 + $0x30] sm:$0xf]
    %v172 = vld [vmem:[#allocation7 + $0x34] sm:$0xf]
    %v173 = vld [vmem:[#allocation7 + $0x38] sm:$0xf]
    %v174 = vld [vmem:[#allocation7 + $0x3c] sm:$0xf]
    %v175 = vld [vmem:[%s4] sm:$0x1]
    %v176 = vpack.c.bf16 %v158, %v158
    %v178 = vlaneseq
    %v179 = vshrl.u32 %v178, 7
    %v180 = vsub.s32 0, %v179
    %v181 = vrot.slane %v175, %v180
    %v199 = vunpack.c.l.b16 %v159
    %v200 = vunpack.c.l.b16 %v160
    %v201 = vunpack.c.l.b16 %v161
    %v202 = vunpack.c.l.b16 %v162
    %v203 = vunpack.c.l.b16 %v163
    %v204 = vunpack.c.l.b16 %v164
    %v205 = vunpack.c.l.b16 %v165
    %v206 = vunpack.c.l.b16 %v166
    %v207 = vunpack.c.l.b16 %v167
    %v208 = vunpack.c.l.b16 %v168
    %v209 = vunpack.c.l.b16 %v169
    %v210 = vunpack.c.l.b16 %v170
    %v211 = vunpack.c.l.b16 %v171
    %v212 = vunpack.c.l.b16 %v172
    %v213 = vunpack.c.l.b16 %v173
    %v214 = vunpack.c.l.b16 %v174
    %v215 = vpack.c.b16 %v200, %v199
    %v216 = vpack.c.b16 %v202, %v201
    %v217 = vpack.c.b16 %v204, %v203
    %v218 = vpack.c.b16 %v206, %v205
    %v219 = vpack.c.b16 %v208, %v207
    %v220 = vpack.c.b16 %v210, %v209
    %v221 = vpack.c.b16 %v212, %v211
    %v222 = vpack.c.b16 %v214, %v213
    %231 = vmatprep.subr.bf16.mxu0 0
    %232 = vmatpush1.bf16.msra.mxu0 %v215
    %233 = vmatprep.subr.bf16.mxu0 0
    %234 = vmatpush1.bf16.msra.mxu0 %v216
    %235 = vmatprep.subr.bf16.mxu0 0
    %236 = vmatpush1.bf16.msra.mxu0 %v217
    %237 = vmatprep.subr.bf16.mxu0 0
    %238 = vmatpush1.bf16.msra.mxu0 %v218
    %239 = vmatprep.subr.bf16.mxu0 0
    %240 = vmatpush1.bf16.msra.mxu0 %v219
    %241 = vmatprep.subr.bf16.mxu0 0
    %242 = vmatpush1.bf16.msra.mxu0 %v220
    %243 = vmatprep.subr.bf16.mxu0 0
    %244 = vmatpush1.bf16.msra.mxu0 %v221
    %245 = vmatprep.subr.bf16.mxu0 0
    %246 = vmatpush1.bf16.msra.mxu0 %v222
    %247 = vmatprep.subr.bf16.mxu0 0
    %248 = vmatpush1.bf16.msra.mxu0 0
    %249 = vmatprep.subr.bf16.mxu0 0
    %250 = vmatpush1.bf16.msra.mxu0 0
    %251 = vmatprep.subr.bf16.mxu0 0
    %252 = vmatpush1.bf16.msra.mxu0 0
    %253 = vmatprep.subr.bf16.mxu0 0
    %254 = vmatpush1.bf16.msra.mxu0 0
    %255 = vmatprep.subr.bf16.mxu0 0
    %256 = vmatpush1.bf16.msra.mxu0 0
    %257 = vmatprep.subr.bf16.mxu0 0
    %258 = vmatpush1.bf16.msra.mxu0 0
    %259 = vmatprep.subr.bf16.mxu0 0
    %260 = vmatpush1.bf16.msra.mxu0 0
    %261 = vmatprep.subr.bf16.mxu0 0
    %262 = vmatpush1.bf16.msra.mxu0 0
    %263 = vmatprep.mubr.bf16.mxu0 0
    %264 = vmatmul.mubr.bf16.gmra.mrb[0].mxu0 %v176
    %v265 = vpop.f32.mrb[0].mxu0
    %v266 = vadd.f32 %v181, %v265
    %v267 = vpop.f32.mrb[0].mxu0
    %v268 = vpop.f32.mrb[0].mxu0
    %v269 = vpop.f32.mrb[0].mxu0
    %270 = vdwg.mxu0
    %v271 = vmax.f32 %v266, 0.0
    %v272 = vld [vmem:[#allocation8] sm:$0xf]
    %v273 = vld [vmem:[#allocation8 + $0x4] sm:$0xf]
    %v274 = vld [vmem:[#allocation8 + $0x8] sm:$0xf]
    %v275 = vld [vmem:[#allocation8 + $0xc] sm:$0xf]
    %v276 = vld [vmem:[#allocation8 + $0x10] sm:$0xf]
    %v277 = vld [vmem:[#allocation8 + $0x14] sm:$0xf]
    %v278 = vld [vmem:[#allocation8 + $0x18] sm:$0xf]
    %v279 = vld [vmem:[#allocation8 + $0x1c] sm:$0xf]
    %v280 = vld [vmem:[#allocation8 + $0x20] sm:$0xf]
    %v281 = vld [vmem:[#allocation8 + $0x24] sm:$0xf]
    %v282 = vld [vmem:[#allocation8 + $0x28] sm:$0xf]
    %v283 = vld [vmem:[#allocation8 + $0x2c] sm:$0xf]
    %v284 = vld [vmem:[#allocation8 + $0x30] sm:$0xf]
    %v285 = vld [vmem:[#allocation8 + $0x34] sm:$0xf]
    %v286 = vld [vmem:[#allocation8 + $0x38] sm:$0xf]
    %v287 = vld [vmem:[#allocation8 + $0x3c] sm:$0xf]
    %v288 = vld [vmem:[%s6] sm:$0x1]
    %v289 = vpack.c.bf16 %v271, %v271
    %v291 = vlaneseq
    %v292 = vshrl.u32 %v291, 7
    %v293 = vsub.s32 0, %v292
    %v294 = vrot.slane %v288, %v293
    %v312 = vunpack.c.l.b16 %v272
    %v313 = vunpack.c.l.b16 %v273
    %v314 = vunpack.c.l.b16 %v274
    %v315 = vunpack.c.l.b16 %v275
    %v316 = vunpack.c.l.b16 %v276
    %v317 = vunpack.c.l.b16 %v277
    %v318 = vunpack.c.l.b16 %v278
    %v319 = vunpack.c.l.b16 %v279
    %v320 = vunpack.c.l.b16 %v280
    %v321 = vunpack.c.l.b16 %v281
    %v322 = vunpack.c.l.b16 %v282
    %v323 = vunpack.c.l.b16 %v283
    %v324 = vunpack.c.l.b16 %v284
    %v325 = vunpack.c.l.b16 %v285
    %v326 = vunpack.c.l.b16 %v286
    %v327 = vunpack.c.l.b16 %v287
    %v328 = vpack.c.b16 %v313, %v312
    %v329 = vpack.c.b16 %v315, %v314
    %v330 = vpack.c.b16 %v317, %v316
    %v331 = vpack.c.b16 %v319, %v318
    %v332 = vpack.c.b16 %v321, %v320
    %v333 = vpack.c.b16 %v323, %v322
    %v334 = vpack.c.b16 %v325, %v324
    %v335 = vpack.c.b16 %v327, %v326
    %344 = vmatprep.subr.bf16.mxu0 0
    %345 = vmatpush1.bf16.msra.mxu0 %v328
    %346 = vmatprep.subr.bf16.mxu0 0
    %347 = vmatpush1.bf16.msra.mxu0 %v329
    %348 = vmatprep.subr.bf16.mxu0 0
    %349 = vmatpush1.bf16.msra.mxu0 %v330
    %350 = vmatprep.subr.bf16.mxu0 0
    %351 = vmatpush1.bf16.msra.mxu0 %v331
    %352 = vmatprep.subr.bf16.mxu0 0
    %353 = vmatpush1.bf16.msra.mxu0 %v332
    %354 = vmatprep.subr.bf16.mxu0 0
    %355 = vmatpush1.bf16.msra.mxu0 %v333
    %356 = vmatprep.subr.bf16.mxu0 0
    %357 = vmatpush1.bf16.msra.mxu0 %v334
    %358 = vmatprep.subr.bf16.mxu0 0
    %359 = vmatpush1.bf16.msra.mxu0 %v335
    %360 = vmatprep.subr.bf16.mxu0 0
    %361 = vmatpush1.bf16.msra.mxu0 0
    %362 = vmatprep.subr.bf16.mxu0 0
    %363 = vmatpush1.bf16.msra.mxu0 0
    %364 = vmatprep.subr.bf16.mxu0 0
    %365 = vmatpush1.bf16.msra.mxu0 0
    %366 = vmatprep.subr.bf16.mxu0 0
    %367 = vmatpush1.bf16.msra.mxu0 0
    %368 = vmatprep.subr.bf16.mxu0 0
    %369 = vmatpush1.bf16.msra.mxu0 0
    %370 = vmatprep.subr.bf16.mxu0 0
    %371 = vmatpush1.bf16.msra.mxu0 0
    %372 = vmatprep.subr.bf16.mxu0 0
    %373 = vmatpush1.bf16.msra.mxu0 0
    %374 = vmatprep.subr.bf16.mxu0 0
    %375 = vmatpush1.bf16.msra.mxu0 0
    %376 = vmatprep.mubr.bf16.mxu0 0
    %377 = vmatmul.mubr.bf16.gmra.mrb[0].mxu0 %v289
    %v378 = vpop.f32.mrb[0].mxu0
    %v379 = vadd.f32 %v294, %v378
    %v380 = vpop.f32.mrb[0].mxu0
    %v381 = vpop.f32.mrb[0].mxu0
    %v382 = vpop.f32.mrb[0].mxu0
    %383 = vdwg.mxu0
    %384 = vst [vmem:[#allocation10] sm:$0xff] %v379
    // Predicated region
    $region46: #{tpu_custom_call.1} parent=1 // pred_check
      _
    $region47: #{tpu_custom_call.1} parent=1 // pred_check_branch
      %386 = sbr.rel (0) target = $region49
    $region48: #{tpu_custom_call.1} parent=1 // pred_region
      %s388 = ssub.s32 128, 128
      %389 = vsyncadd [#allocation4], %s388
      %s391 = sshll.u32 [#allocation10], 4
      %s392 = int_to_ptr.vmem [resolvable:$true] %s391
      %394 = dma.vmem_to_hbm [thread:$0]  %s392, 128, %s7, [#allocation4]
    $region49: #{tpu_custom_call.1} parent=1 // pred_fallthru
      _
    // Predicated region
    $region50: #{tpu_custom_call.1} parent=1 // pred_check
      _
    $region51: #{tpu_custom_call.1} parent=1 // pred_check_branch
      %396 = sbr.rel (0) target = $region53
    $region52: #{tpu_custom_call.1} parent=1 // pred_region
      %397 = dma.done [#allocation4], 128
    $region53: #{tpu_custom_call.1} parent=1 // pred_fallthru
      _
    %398 = vsyncpa [#allocation3], 1
    %399 = vsyncpa [#allocation6], 1
    %400 = vsyncpa [#allocation9], 1
    %401 = vsyncpa [#allocation4], 1

// kernel: tpu_custom_call.1
$region0: #{tpu_custom_call.1}
  #allocation0 [shape = 'u32[]', space=smem, size = 0x4, offset = 0x4, fixed_abs, tag = 'smem constant byte address 0x4 - core index']
  #allocation1 [shape = 'u32[144,128]{1,0:T(1,128)}', space=vmem, size = 0x12000, scoped, tag = 'internal scratch']
  %s0 = inlined_call_operand.hbm [shape: f32[8,40], index: 0, kind: input, shape index: {}]
  %s1 = inlined_call_operand.hbm [shape: bf16[40,128], index: 1, kind: input, shape index: {}]
  %s2 = inlined_call_operand.vmem [shape: f32[1,128], index: 2, kind: input, shape index: {}]
  %s3 = inlined_call_operand.hbm [shape: bf16[128,128], index: 3, kind: input, shape index: {}]
  %s4 = inlined_call_operand.vmem [shape: f32[1,128], index: 4, kind: input, shape index: {}]
  %s5 = inlined_call_operand.hbm [shape: bf16[128,128], index: 5, kind: input, shape index: {}]
  %s6 = inlined_call_operand.vmem [shape: f32[1,128], index: 6, kind: input, shape index: {}]
  %s7 = inlined_call_operand.hbm [shape: f32[8,128], index: 7, kind: output, shape index: {}]
  %s8 = sld [smem:[#allocation0]]
  $region54: #{tpu_custom_call.1} parent=0
    _
  %s10 = ssub.s32 1, %s8
  %s11 = scalar_select 0, %s10, %s8
  $region1: #{tpu_custom_call.1} parent=0
    #allocation2 [shape = 'u8[4096]{0}', space=vmem, size = 0x1000, scoped, tag = 'input window, operand 0, single buffered']
    #allocation3 [shape = 's32[1]{0}', space=sflag, size = 0x4, scoped, tag = 'scoped memory for tpu_custom_call.1']
    #allocation4 [shape = 's32[1]{0}', space=sflag, size = 0x4, scoped, tag = 'scoped memory for tpu_custom_call.1']
    #allocation5 [shape = 'u8[10240]{0}', space=vmem, size = 0x2800, scoped, tag = 'input window, operand 1, single buffered']
    #allocation6 [shape = 's32[1]{0}', space=sflag, size = 0x4, scoped, tag = 'scoped memory for tpu_custom_call.1']
    #allocation7 [shape = 'u8[32768]{0}', space=vmem, size = 0x8000, scoped, tag = 'input window, operand 3, single buffered']
    #allocation8 [shape = 'u8[32768]{0}', space=vmem, size = 0x8000, scoped, tag = 'input window, operand 5, single buffered']
    #allocation9 [shape = 's32[1]{0}', space=sflag, size = 0x4, scoped, tag = 'scoped memory for tpu_custom_call.1']
    #allocation10 [shape = 'u8[4096]{0}', space=vmem, size = 0x1000, scoped, tag = 'output window, operand 0, single buffered']
    %12 = vsyncpa [#allocation3], 0
    %13 = vsyncpa [#allocation6], 0
    %14 = vsyncpa [#allocation9], 0
    %15 = vsyncpa [#allocation4], 0
    // Predicated region
    $region2: #{tpu_custom_call.1} parent=1 // pred_check
      _
    $region3: #{tpu_custom_call.1} parent=1 // pred_check_branch
      %17 = sbr.rel (0) target = $region5
    $region4: #{tpu_custom_call.1} parent=1 // pred_region
      %s19 = ssub.s32 128, 128
      %20 = vsyncadd [#allocation3], %s19
      %s22 = sshll.u32 [#allocation2], 4
      %s23 = int_to_ptr.vmem [resolvable:$true] %s22
      %25 = dma.hbm_to_vmem [thread:$0]  %s0, 128, %s23, [#allocation3]
    $region5: #{tpu_custom_call.1} parent=1 // pred_fallthru
      _
    // Predicated region
    $region6: #{tpu_custom_call.1} parent=1 // pred_check
      _
    $region7: #{tpu_custom_call.1} parent=1 // pred_check_branch
      %27 = sbr.rel (0) target = $region9
    $region8: #{tpu_custom_call.1} parent=1 // pred_region
      %s29 = ssub.s32 320, 320
      %30 = vsyncadd [#allocation6], %s29
      %s31 = sshll.u32 [#allocation5], 4
      %s32 = int_to_ptr.vmem [resolvable:$true] %s31
      %37 = dma.hbm_to_vmem [thread:$0]  %s1, 320, %s32, [#allocation6], 64, 64, 4
    $region9: #{tpu_custom_call.1} parent=1 // pred_fallthru
      _
    // Predicated region
    $region10: #{tpu_custom_call.1} parent=1 // pred_check
      _
    $region11: #{tpu_custom_call.1} parent=1 // pred_check_branch
      %39 = sbr.rel (0) target = $region13
    $region12: #{tpu_custom_call.1} parent=1 // pred_region
      _
    $region13: #{tpu_custom_call.1} parent=1 // pred_fallthru
      _
    // Predicated region
    $region14: #{tpu_custom_call.1} parent=1 // pred_check
      _
    $region15: #{tpu_custom_call.1} parent=1 // pred_check_branch
      %41 = sbr.rel (0) target = $region17
    $region16: #{tpu_custom_call.1} parent=1 // pred_region
      %s43 = ssub.s32 1024, 1024
      %44 = vsyncadd [#allocation6], %s43
      %s45 = sshll.u32 [#allocation7], 4
      %s46 = int_to_ptr.vmem [resolvable:$true] %s45
      %51 = dma.hbm_to_vmem [thread:$0]  %s3, 1024, %s46, [#allocation6], 64, 64, 4
    $region17: #{tpu_custom_call.1} parent=1 // pred_fallthru
      _
    // Predicated region
    $region18: #{tpu_custom_call.1} parent=1 // pred_check
      _
    $region19: #{tpu_custom_call.1} parent=1 // pred_check_branch
      %53 = sbr.rel (0) target = $region21
    $region20: #{tpu_custom_call.1} parent=1 // pred_region
      _
    $region21: #{tpu_custom_call.1} parent=1 // pred_fallthru
      _
    // Predicated region
    $region22: #{tpu_custom_call.1} parent=1 // pred_check
      _
    $region23: #{tpu_custom_call.1} parent=1 // pred_check_branch
      %55 = sbr.rel (0) target = $region25
    $region24: #{tpu_custom_call.1} parent=1 // pred_region
      %s57 = ssub.s32 1024, 1024
      %58 = vsyncadd [#allocation9], %s57
      %s59 = sshll.u32 [#allocation8], 4
      %s60 = int_to_ptr.vmem [resolvable:$true] %s59
      %65 = dma.hbm_to_vmem [thread:$0]  %s5, 1024, %s60, [#allocation9], 64, 64, 4
    $region25: #{tpu_custom_call.1} parent=1 // pred_fallthru
      _
    // Predicated region
    $region26: #{tpu_custom_call.1} parent=1 // pred_check
      _
    $region27: #{tpu_custom_call.1} parent=1 // pred_check_branch
      %67 = sbr.rel (0) target = $region29
    $region28: #{tpu_custom_call.1} parent=1 // pred_region
      _
    $region29: #{tpu_custom_call.1} parent=1 // pred_fallthru
      _
    // Predicated region
    $region30: #{tpu_custom_call.1} parent=1 // pred_check
      _
    $region31: #{tpu_custom_call.1} parent=1 // pred_check_branch
      %69 = sbr.rel (0) target = $region33
    $region32: #{tpu_custom_call.1} parent=1 // pred_region
      %70 = dma.done [#allocation3], 128
    $region33: #{tpu_custom_call.1} parent=1 // pred_fallthru
      _
    // Predicated region
    $region34: #{tpu_custom_call.1} parent=1 // pred_check
      _
    $region35: #{tpu_custom_call.1} parent=1 // pred_check_branch
      %72 = sbr.rel (0) target = $region37
    $region36: #{tpu_custom_call.1} parent=1 // pred_region
      %73 = dma.done [#allocation6], 320
    $region37: #{tpu_custom_call.1} parent=1 // pred_fallthru
      _
    // Predicated region
    $region38: #{tpu_custom_call.1} parent=1 // pred_check
      _
    $region39: #{tpu_custom_call.1} parent=1 // pred_check_branch
      %75 = sbr.rel (0) target = $region41
    $region40: #{tpu_custom_call.1} parent=1 // pred_region
      %76 = dma.done [#allocation6], 1024
    $region41: #{tpu_custom_call.1} parent=1 // pred_fallthru
      _
    // Predicated region
    $region42: #{tpu_custom_call.1} parent=1 // pred_check
      _
    $region43: #{tpu_custom_call.1} parent=1 // pred_check_branch
      %78 = sbr.rel (0) target = $region45
    $region44: #{tpu_custom_call.1} parent=1 // pred_region
      %79 = dma.done [#allocation9], 1024
    $region45: #{tpu_custom_call.1} parent=1 // pred_fallthru
      _
    %v81 = vld [vmem:[#allocation2] sm:$0xff]
    %v82 = vld [vmem:[#allocation5] sm:$0xf]
    %v83 = vld [vmem:[#allocation5 + $0x4] sm:$0xf]
    %v84 = vld [vmem:[#allocation5 + $0x8] sm:$0xf]
    %v85 = vld [vmem:[#allocation5 + $0xc] sm:$0xf]
    %v86 = vld [vmem:[#allocation5 + $0x10] sm:$0xf]
    %v87 = vld [vmem:[%s2] sm:$0x1]
    %v88 = vpack.c.bf16 %v81, %v81
    %v90 = vlaneseq
    %v91 = vshrl.u32 %v90, 7
    %v92 = vsub.s32 0, %v91
    %v93 = vrot.slane %v87, %v92
    %v100 = vunpack.c.l.b16 %v82
    %v101 = vunpack.c.l.b16 %v83
    %v102 = vunpack.c.l.b16 %v84
    %v103 = vunpack.c.l.b16 %v85
    %v104 = vunpack.c.l.b16 %v86
    %v105 = vpack.c.b16 %v101, %v100
    %v106 = vpack.c.b16 %v103, %v102
    %v107 = vpack.c.b16 %v104, %v104
    %vm110 = vcmask 326656
    %v112 = vsel %vm110, %v88, 0
    %vm114 = vcmask 1043456
    %v116 = vsel %vm114, %v107, 0
    %118 = vmatprep.subr.bf16.mxu0 0
    %119 = vmatpush1.bf16.msra.mxu0 %v105
    %120 = vmatprep.subr.bf16.mxu0 0
    %121 = vmatpush1.bf16.msra.mxu0 %v106
    %122 = vmatprep.subr.bf16.mxu0 0
    %123 = vmatpush1.bf16.msra.mxu0 %v116
    %124 = vmatprep.subr.bf16.mxu0 0
    %125 = vmatpush1.bf16.msra.mxu0 0
    %126 = vmatprep.subr.bf16.mxu0 0
    %127 = vmatpush1.bf16.msra.mxu0 0
    %128 = vmatprep.subr.bf16.mxu0 0
    %129 = vmatpush1.bf16.msra.mxu0 0
    %130 = vmatprep.subr.bf16.mxu0 0
    %131 = vmatpush1.bf16.msra.mxu0 0
    %132 = vmatprep.subr.bf16.mxu0 0
    %133 = vmatpush1.bf16.msra.mxu0 0
    %134 = vmatprep.subr.bf16.mxu0 0
    %135 = vmatpush1.bf16.msra.mxu0 0
    %136 = vmatprep.subr.bf16.mxu0 0
    %137 = vmatpush1.bf16.msra.mxu0 0
    %138 = vmatprep.subr.bf16.mxu0 0
    %139 = vmatpush1.bf16.msra.mxu0 0
    %140 = vmatprep.subr.bf16.mxu0 0
    %141 = vmatpush1.bf16.msra.mxu0 0
    %142 = vmatprep.subr.bf16.mxu0 0
    %143 = vmatpush1.bf16.msra.mxu0 0
    %144 = vmatprep.subr.bf16.mxu0 0
    %145 = vmatpush1.bf16.msra.mxu0 0
    %146 = vmatprep.subr.bf16.mxu0 0
    %147 = vmatpush1.bf16.msra.mxu0 0
    %148 = vmatprep.subr.bf16.mxu0 0
    %149 = vmatpush1.bf16.msra.mxu0 0
    %150 = vmatprep.mubr.bf16.mxu0 0
    %151 = vmatmul.mubr.bf16.gmra.mrb[0].mxu0 %v112
    %v152 = vpop.f32.mrb[0].mxu0
    %v153 = vadd.f32 %v93, %v152
    %v154 = vpop.f32.mrb[0].mxu0
    %v155 = vpop.f32.mrb[0].mxu0
    %v156 = vpop.f32.mrb[0].mxu0
    %157 = vdwg.mxu0
    %v158 = vmax.f32 %v153, 0.0
    %v159 = vld [vmem:[#allocation7] sm:$0xf]
    %v160 = vld [vmem:[#allocation7 + $0x4] sm:$0xf]
    %v161 = vld [vmem:[#allocation7 + $0x8] sm:$0xf]
    %v162 = vld [vmem:[#allocation7 + $0xc] sm:$0xf]
    %v163 = vld [vmem:[#allocation7 + $0x10] sm:$0xf]
    %v164 = vld [vmem:[#allocation7 + $0x14] sm:$0xf]
    %v165 = vld [vmem:[#allocation7 + $0x18] sm:$0xf]
    %v166 = vld [vmem:[#allocation7 + $0x1c] sm:$0xf]
    %v167 = vld [vmem:[#allocation7 + $0x20] sm:$0xf]
    %v168 = vld [vmem:[#allocation7 + $0x24] sm:$0xf]
    %v169 = vld [vmem:[#allocation7 + $0x28] sm:$0xf]
    %v170 = vld [vmem:[#allocation7 + $0x2c] sm:$0xf]
    %v171 = vld [vmem:[#allocation7 + $0x30] sm:$0xf]
    %v172 = vld [vmem:[#allocation7 + $0x34] sm:$0xf]
    %v173 = vld [vmem:[#allocation7 + $0x38] sm:$0xf]
    %v174 = vld [vmem:[#allocation7 + $0x3c] sm:$0xf]
    %v175 = vld [vmem:[%s4] sm:$0x1]
    %v176 = vpack.c.bf16 %v158, %v158
    %v178 = vlaneseq
    %v179 = vshrl.u32 %v178, 7
    %v180 = vsub.s32 0, %v179
    %v181 = vrot.slane %v175, %v180
    %v199 = vunpack.c.l.b16 %v159
    %v200 = vunpack.c.l.b16 %v160
    %v201 = vunpack.c.l.b16 %v161
    %v202 = vunpack.c.l.b16 %v162
    %v203 = vunpack.c.l.b16 %v163
    %v204 = vunpack.c.l.b16 %v164
    %v205 = vunpack.c.l.b16 %v165
    %v206 = vunpack.c.l.b16 %v166
    %v207 = vunpack.c.l.b16 %v167
    %v208 = vunpack.c.l.b16 %v168
    %v209 = vunpack.c.l.b16 %v169
    %v210 = vunpack.c.l.b16 %v170
    %v211 = vunpack.c.l.b16 %v171
    %v212 = vunpack.c.l.b16 %v172
    %v213 = vunpack.c.l.b16 %v173
    %v214 = vunpack.c.l.b16 %v174
    %v215 = vpack.c.b16 %v200, %v199
    %v216 = vpack.c.b16 %v202, %v201
    %v217 = vpack.c.b16 %v204, %v203
    %v218 = vpack.c.b16 %v206, %v205
    %v219 = vpack.c.b16 %v208, %v207
    %v220 = vpack.c.b16 %v210, %v209
    %v221 = vpack.c.b16 %v212, %v211
    %v222 = vpack.c.b16 %v214, %v213
    %231 = vmatprep.subr.bf16.mxu0 0
    %232 = vmatpush1.bf16.msra.mxu0 %v215
    %233 = vmatprep.subr.bf16.mxu0 0
    %234 = vmatpush1.bf16.msra.mxu0 %v216
    %235 = vmatprep.subr.bf16.mxu0 0
    %236 = vmatpush1.bf16.msra.mxu0 %v217
    %237 = vmatprep.subr.bf16.mxu0 0
    %238 = vmatpush1.bf16.msra.mxu0 %v218
    %239 = vmatprep.subr.bf16.mxu0 0
    %240 = vmatpush1.bf16.msra.mxu0 %v219
    %241 = vmatprep.subr.bf16.mxu0 0
    %242 = vmatpush1.bf16.msra.mxu0 %v220
    %243 = vmatprep.subr.bf16.mxu0 0
    %244 = vmatpush1.bf16.msra.mxu0 %v221
    %245 = vmatprep.subr.bf16.mxu0 0
    %246 = vmatpush1.bf16.msra.mxu0 %v222
    %247 = vmatprep.subr.bf16.mxu0 0
    %248 = vmatpush1.bf16.msra.mxu0 0
    %249 = vmatprep.subr.bf16.mxu0 0
    %250 = vmatpush1.bf16.msra.mxu0 0
    %251 = vmatprep.subr.bf16.mxu0 0
    %252 = vmatpush1.bf16.msra.mxu0 0
    %253 = vmatprep.subr.bf16.mxu0 0
    %254 = vmatpush1.bf16.msra.mxu0 0
    %255 = vmatprep.subr.bf16.mxu0 0
    %256 = vmatpush1.bf16.msra.mxu0 0
    %257 = vmatprep.subr.bf16.mxu0 0
    %258 = vmatpush1.bf16.msra.mxu0 0
    %259 = vmatprep.subr.bf16.mxu0 0
    %260 = vmatpush1.bf16.msra.mxu0 0
    %261 = vmatprep.subr.bf16.mxu0 0
    %262 = vmatpush1.bf16.msra.mxu0 0
    %263 = vmatprep.mubr.bf16.mxu0 0
    %264 = vmatmul.mubr.bf16.gmra.mrb[0].mxu0 %v176
    %v265 = vpop.f32.mrb[0].mxu0
    %v266 = vadd.f32 %v181, %v265
    %v267 = vpop.f32.mrb[0].mxu0
    %v268 = vpop.f32.mrb[0].mxu0
    %v269 = vpop.f32.mrb[0].mxu0
    %270 = vdwg.mxu0
    %v271 = vmax.f32 %v266, 0.0
    %v272 = vld [vmem:[#allocation8] sm:$0xf]
    %v273 = vld [vmem:[#allocation8 + $0x4] sm:$0xf]
    %v274 = vld [vmem:[#allocation8 + $0x8] sm:$0xf]
    %v275 = vld [vmem:[#allocation8 + $0xc] sm:$0xf]
    %v276 = vld [vmem:[#allocation8 + $0x10] sm:$0xf]
    %v277 = vld [vmem:[#allocation8 + $0x14] sm:$0xf]
    %v278 = vld [vmem:[#allocation8 + $0x18] sm:$0xf]
    %v279 = vld [vmem:[#allocation8 + $0x1c] sm:$0xf]
    %v280 = vld [vmem:[#allocation8 + $0x20] sm:$0xf]
    %v281 = vld [vmem:[#allocation8 + $0x24] sm:$0xf]
    %v282 = vld [vmem:[#allocation8 + $0x28] sm:$0xf]
    %v283 = vld [vmem:[#allocation8 + $0x2c] sm:$0xf]
    %v284 = vld [vmem:[#allocation8 + $0x30] sm:$0xf]
    %v285 = vld [vmem:[#allocation8 + $0x34] sm:$0xf]
    %v286 = vld [vmem:[#allocation8 + $0x38] sm:$0xf]
    %v287 = vld [vmem:[#allocation8 + $0x3c] sm:$0xf]
    %v288 = vld [vmem:[%s6] sm:$0x1]
    %v289 = vpack.c.bf16 %v271, %v271
    %v291 = vlaneseq
    %v292 = vshrl.u32 %v291, 7
    %v293 = vsub.s32 0, %v292
    %v294 = vrot.slane %v288, %v293
    %v312 = vunpack.c.l.b16 %v272
    %v313 = vunpack.c.l.b16 %v273
    %v314 = vunpack.c.l.b16 %v274
    %v315 = vunpack.c.l.b16 %v275
    %v316 = vunpack.c.l.b16 %v276
    %v317 = vunpack.c.l.b16 %v277
    %v318 = vunpack.c.l.b16 %v278
    %v319 = vunpack.c.l.b16 %v279
    %v320 = vunpack.c.l.b16 %v280
    %v321 = vunpack.c.l.b16 %v281
    %v322 = vunpack.c.l.b16 %v282
    %v323 = vunpack.c.l.b16 %v283
    %v324 = vunpack.c.l.b16 %v284
    %v325 = vunpack.c.l.b16 %v285
    %v326 = vunpack.c.l.b16 %v286
    %v327 = vunpack.c.l.b16 %v287
    %v328 = vpack.c.b16 %v313, %v312
    %v329 = vpack.c.b16 %v315, %v314
    %v330 = vpack.c.b16 %v317, %v316
    %v331 = vpack.c.b16 %v319, %v318
    %v332 = vpack.c.b16 %v321, %v320
    %v333 = vpack.c.b16 %v323, %v322
    %v334 = vpack.c.b16 %v325, %v324
    %v335 = vpack.c.b16 %v327, %v326
    %344 = vmatprep.subr.bf16.mxu0 0
    %345 = vmatpush1.bf16.msra.mxu0 %v328
    %346 = vmatprep.subr.bf16.mxu0 0
    %347 = vmatpush1.bf16.msra.mxu0 %v329
    %348 = vmatprep.subr.bf16.mxu0 0
    %349 = vmatpush1.bf16.msra.mxu0 %v330
    %350 = vmatprep.subr.bf16.mxu0 0
    %351 = vmatpush1.bf16.msra.mxu0 %v331
    %352 = vmatprep.subr.bf16.mxu0 0
    %353 = vmatpush1.bf16.msra.mxu0 %v332
    %354 = vmatprep.subr.bf16.mxu0 0
    %355 = vmatpush1.bf16.msra.mxu0 %v333
    %356 = vmatprep.subr.bf16.mxu0 0
    %357 = vmatpush1.bf16.msra.mxu0 %v334
    %358 = vmatprep.subr.bf16.mxu0 0
    %359 = vmatpush1.bf16.msra.mxu0 %v335
    %360 = vmatprep.subr.bf16.mxu0 0
    %361 = vmatpush1.bf16.msra.mxu0 0
    %362 = vmatprep.subr.bf16.mxu0 0
    %363 = vmatpush1.bf16.msra.mxu0 0
    %364 = vmatprep.subr.bf16.mxu0 0
    %365 = vmatpush1.bf16.msra.mxu0 0
    %366 = vmatprep.subr.bf16.mxu0 0
    %367 = vmatpush1.bf16.msra.mxu0 0
    %368 = vmatprep.subr.bf16.mxu0 0
    %369 = vmatpush1.bf16.msra.mxu0 0
    %370 = vmatprep.subr.bf16.mxu0 0
    %371 = vmatpush1.bf16.msra.mxu0 0
    %372 = vmatprep.subr.bf16.mxu0 0
    %373 = vmatpush1.bf16.msra.mxu0 0
    %374 = vmatprep.subr.bf16.mxu0 0
    %375 = vmatpush1.bf16.msra.mxu0 0
    %376 = vmatprep.mubr.bf16.mxu0 0
    %377 = vmatmul.mubr.bf16.gmra.mrb[0].mxu0 %v289
    %v378 = vpop.f32.mrb[0].mxu0
    %v379 = vadd.f32 %v294, %v378
    %v380 = vpop.f32.mrb[0].mxu0
    %v381 = vpop.f32.mrb[0].mxu0
    %v382 = vpop.f32.mrb[0].mxu0
    %383 = vdwg.mxu0
    %384 = vst [vmem:[#allocation10] sm:$0xff] %v379
    // Predicated region
    $region46: #{tpu_custom_call.1} parent=1 // pred_check
      _
    $region47: #{tpu_custom_call.1} parent=1 // pred_check_branch
      %386 = sbr.rel (0) target = $region49
    $region48: #{tpu_custom_call.1} parent=1 // pred_region
      %s388 = ssub.s32 128, 128
      %389 = vsyncadd [#allocation4], %s388
      %s391 = sshll.u32 [#allocation10], 4
      %s392 = int_to_ptr.vmem [resolvable:$true] %s391
      %394 = dma.vmem_to_hbm [thread:$0]  %s392, 128, %s7, [#allocation4]
    $region49: #{tpu_custom_call.1} parent=1 // pred_fallthru
      _
    // Predicated region
    $region50: #{tpu_custom_call.1} parent=1 // pred_check
      _
    $region51: #{tpu_custom_call.1} parent=1 // pred_check_branch
      %396 = sbr.rel (0) target = $region53
    $region52: #{tpu_custom_call.1} parent=1 // pred_region
      %397 = dma.done [#allocation4], 128
    $region53: #{tpu_custom_call.1} parent=1 // pred_fallthru
      _
    %398 = vsyncpa [#allocation3], 1
    %399 = vsyncpa [#allocation6], 1
    %400 = vsyncpa [#allocation9], 1
    %401 = vsyncpa [#allocation4], 1

</llo_original>
